<compile_context>
chip_gen: v7x
topology: tpu7x:2x2x1
jax: 0.10.0
libtpu: 0.0.40
codegen_flags: <defaults>
</compile_context>

<pallas_src>
import functools

import numpy as np
import jax
import jax.numpy as jnp
from jax.experimental import pallas as pl
from jax.experimental.pallas import tpu as pltpu


def _make_tap_masks(H, W, b_tile):
    """(9, b_tile*H*W) f32 multiplicative masks, one per 3x3 tap, tap order (dy, dx)."""
    HW = H * W
    r = np.arange(HW) // W
    c = np.arange(HW) % W
    masks = np.ones((9, HW), np.float32)
    t = 0
    for dy in (-1, 0, 1):
        for dx in (-1, 0, 1):
            m = np.ones(HW, np.float32)
            if dy == -1:
                m *= (r >= 1)
            if dy == 1:
                m *= (r <= H - 2)
            if dx == -1:
                m *= (c >= 1)
            if dx == 1:
                m *= (c <= W - 2)
            masks[t] = m
            t += 1
    return np.tile(masks, (1, b_tile))            # same pattern for every image in the tile


def _residual_conv_block_kernel(H, W, cout, x_ref, m_ref, wbig_ref, b1_ref,
                                w2_ref, b2bs_ref, o_ref):
    # x_ref   : (Cin_pad, L)        L = b_tile*H*W, images lane-concatenated
    # m_ref   : (9, L)       f32    precomputed per-tap border masks (tap 4 == all ones)
    # wbig_ref: (2*Cout, 9*Cin_pad) bf16  rows [0:Cout] = conv1, rows [Cout:] = 1x1 skip
    # b1_ref  : (Cout, 1)    f32
    # w2_ref  : (Cout, 9*Cout) bf16
    # b2bs_ref: (Cout, 1)    f32    b2 + bs pre-added host-side
    # o_ref   : (Cout, L)           lane-dense -> unmasked stores
    L = x_ref.shape[1]

    def im2col(v):
        """v: (C, L) f32 -> (9*C, L) bf16 patch matrix with zeroed image borders."""
        C = v.shape[0]
        z = jnp.zeros((C, W + 1), jnp.float32)
        vwide = jnp.concatenate([z, v, z], axis=1)            # (C, L + 2W + 2)
        taps = []
        t = 0
        for dy in (-1, 0, 1):
            for dx in (-1, 0, 1):
                d = dy * W + dx
                win = vwide[:, W + 1 + d: W + 1 + d + L]      # win[:, i] = v[:, i + d]
                if t != 4:                                    # center tap needs no mask
                    win = win * m_ref[t:t + 1, :]             # (1, L) broadcast over C rows
                taps.append(win)
                t += 1
        return jnp.concatenate(taps, axis=0).astype(jnp.bfloat16)

    x = x_ref[...].astype(jnp.float32)                        # (Cin_pad, L)

    # ---- conv1 (3x3) + 1x1 skip in ONE matmul -----------------------------------
    p1 = im2col(x)                                            # (9*Cin_pad, L)
    h_all = jnp.dot(wbig_ref[...], p1, preferred_element_type=jnp.float32)  # (2*Cout, L)
    h1 = jnp.maximum(h_all[:cout, :] + b1_ref[...], 0.0)      # bias + ReLU, f32
    skip = h_all[cout:, :]                                    # 1x1 conv, pre-bias

    # ---- conv2 (3x3): intermediate stays in registers ----------------------------
    p2 = im2col(h1)                                           # (9*Cout, L)
    y = jnp.dot(w2_ref[...], p2, preferred_element_type=jnp.float32)

    # ---- residual add + merged (b2 + bs) bias ------------------------------------
    o_ref[...] = (y + skip + b2bs_ref[...]).astype(o_ref.dtype)


@functools.partial(jax.jit, static_argnames=("num_batch_tiles",))
def residual_conv_block(x_nchw, params, num_batch_tiles=1):
    """Matches PyTorch ResidualConvBlock.forward: NCHW in -> NCHW out.

    num_batch_tiles=1 (default): single grid step covering the whole batch (best on
    single-TensorCore v5e/v6e). Use num_batch_tiles=2 on v7x (one tile per TC).
    """
    N, Cin, H, W = x_nchw.shape
    Cout = params["w1"].shape[0]                              # PyTorch OIHW: (Cout, Cin, 3, 3)
    HW = H * W
    assert N % num_batch_tiles == 0
    b_tile = N // num_batch_tiles
    L = b_tile * HW                                           # lane extent per grid step
    cin_pad = -(-Cin // 8) * 8                                # pad Cin to (8,128) f32 tiles

    # ---- input: (N, Cin, H, W) -> lane-concatenated (Cin_pad, N*HW) ---------------
    x_cnl = jnp.transpose(x_nchw.reshape(N, Cin, HW), (1, 0, 2)).reshape(Cin, N * HW)
    if cin_pad > Cin:
        x_cnl = jnp.pad(x_cnl, ((0, cin_pad - Cin), (0, 0)))

    # ---- precomputed per-tap border masks (numpy constant, resident in VMEM) ------
    masks = jnp.asarray(_make_tap_masks(H, W, b_tile))        # (9, L) f32

    # ---- weights: im2col layout, skip folded into conv1, biases merged ------------
    # conv1: OIHW -> (Cout, ky, kx, Cin) -> zero-pad Cin -> (Cout, 9*Cin_pad)
    w1 = jnp.transpose(params["w1"], (0, 2, 3, 1))            # (Cout, 3, 3, Cin)
    w1 = jnp.pad(w1, ((0, 0), (0, 0), (0, 0), (0, cin_pad - Cin))).reshape(Cout, 9 * cin_pad)
    # 1x1 skip: embedded in the center-tap (t=4) columns
    ws = params["ws"].reshape(Cout, Cin)
    wskip = jnp.zeros((Cout, 9, cin_pad), jnp.float32).at[:, 4, :Cin].set(ws)
    wskip = wskip.reshape(Cout, 9 * cin_pad)
    wbig = jnp.concatenate([w1, wskip], axis=0).astype(jnp.bfloat16)   # (2*Cout, 9*Cin_pad)

    w2 = jnp.transpose(params["w2"], (0, 2, 3, 1)).reshape(Cout, 9 * Cout).astype(jnp.bfloat16)
    b1 = params["b1"].reshape(Cout, 1).astype(jnp.float32)
    b2bs = (params["b2"] + params["bs"]).reshape(Cout, 1).astype(jnp.float32)

    kernel = functools.partial(_residual_conv_block_kernel, H, W, Cout)

    y_flat = pl.pallas_call(
        kernel,
        out_shape=jax.ShapeDtypeStruct((Cout, N * HW), x_nchw.dtype),
        grid_spec=pltpu.PrefetchScalarGridSpec(
            num_scalar_prefetch=0,
            grid=(num_batch_tiles,),                          # batch-tile axis
            in_specs=[
                pl.BlockSpec((cin_pad, L), lambda t: (0, t)),          # x tile
                pl.BlockSpec((9, L), lambda t: (0, 0)),                # tap masks (resident)
                pl.BlockSpec((2 * Cout, 9 * cin_pad), lambda t: (0, 0)),  # conv1+skip weights
                pl.BlockSpec((Cout, 1), lambda t: (0, 0)),             # b1
                pl.BlockSpec((Cout, 9 * Cout), lambda t: (0, 0)),      # conv2 weights
                pl.BlockSpec((Cout, 1), lambda t: (0, 0)),             # b2 + bs
            ],
            out_specs=pl.BlockSpec((Cout, L), lambda t: (0, t)),
        ),
        # batch tiles are independent -> sharded across the 2 TCs on v7x, no-op on v5e/v6e.
        compiler_params=pltpu.CompilerParams(dimension_semantics=("parallel",)),
    )(x_cnl, masks, wbig, b1, w2, b2bs)

    # (Cout, N*HW) -> (N, Cout, H, W)
    return jnp.transpose(y_flat.reshape(Cout, N, HW), (1, 0, 2)).reshape(N, Cout, H, W)


def _reference_nchw(x, params):
    """Pure-JAX reference (lax conv, f32 HIGHEST) for numerical validation."""
    def conv(v, w, b):
        return jax.lax.conv_general_dilated(
            v, w, (1, 1), "SAME",
            dimension_numbers=("NCHW", "OIHW", "NCHW"),
            precision=jax.lax.Precision.HIGHEST) + b.reshape(1, -1, 1, 1)
    h = jax.nn.relu(conv(x, params["w1"], params["b1"]))
    y = conv(h, params["w2"], params["b2"])
    s = conv(x, params["ws"], params["bs"])
    return y + s


if __name__ == "__main__":
    N, Cin, H, W = 2, 4, 16, 16       # PyTorch-style NCHW input (2, 4, 16, 16)
    Cout = 8

    key = jax.random.PRNGKey(0)
    kx, k1, kb1, k2, kb2, ks, kbs = jax.random.split(key, 7)

    x_nchw = jax.random.normal(kx, (N, Cin, H, W), jnp.float32)

    # Deterministic synthetic parameters in PyTorch nn.Conv2d layouts (OIHW).
    params = {
        "w1": 0.1 * jax.random.normal(k1, (Cout, Cin, 3, 3), jnp.float32),
        "b1": 0.1 * jax.random.normal(kb1, (Cout,), jnp.float32),
        "w2": 0.1 * jax.random.normal(k2, (Cout, Cout, 3, 3), jnp.float32),
        "b2": 0.1 * jax.random.normal(kb2, (Cout,), jnp.float32),
        "ws": 0.1 * jax.random.normal(ks, (Cout, Cin, 1, 1), jnp.float32),
        "bs": 0.1 * jax.random.normal(kbs, (Cout,), jnp.float32),
    }

    y_nchw = residual_conv_block(x_nchw, params)      # num_batch_tiles=1: one grid step
    y_nchw = jax.block_until_ready(y_nchw)
    assert y_nchw.shape == (N, Cout, H, W), y_nchw.shape

    # Validate against the f32 HIGHEST-precision reference. Kernel matmuls run in
    # bf16 with f32 accumulation, so allow a correspondingly looser tolerance.
    y_ref = _reference_nchw(x_nchw, params)
    err = float(jnp.max(jnp.abs(y_nchw - y_ref)))
    assert err < 5e-2, f"max abs error {err}"

    print("KERNEL_OK")
</pallas_src>

<mosaic_0001>
module attributes {stable_mosaic.version = 11 : i64} {
  func.func @_residual_conv_block_kernel(%arg0: i32, %arg1: memref<8x512xf32, #tpu.memory_space<vmem>>, %arg2: memref<9x512xf32, #tpu.memory_space<vmem>>, %arg3: memref<16x72xbf16, #tpu.memory_space<vmem>>, %arg4: memref<8x1xf32, #tpu.memory_space<vmem>>, %arg5: memref<8x72xbf16, #tpu.memory_space<vmem>>, %arg6: memref<8x1xf32, #tpu.memory_space<vmem>>, %arg7: memref<8x512xf32, #tpu.memory_space<vmem>>) attributes {dimension_semantics = [#tpu.dimension_semantics<parallel>], iteration_bounds = array<i64: 1>, scalar_prefetch = 0 : i64, scratch_operands = 0 : i64, tpu.core_type = #tpu.core_type<tc>, window_params = [{transform_indices = @transform_0, window_bounds = array<i64: 8, 512>}, {pipeline_mode = #tpu.pipeline_mode<synchronous>, transform_indices = @transform_1, window_bounds = array<i64: 9, 512>}, {pipeline_mode = #tpu.pipeline_mode<synchronous>, transform_indices = @transform_2, window_bounds = array<i64: 16, 72>}, {pipeline_mode = #tpu.pipeline_mode<synchronous>, transform_indices = @transform_3, window_bounds = array<i64: 8, 1>}, {pipeline_mode = #tpu.pipeline_mode<synchronous>, transform_indices = @transform_4, window_bounds = array<i64: 8, 72>}, {pipeline_mode = #tpu.pipeline_mode<synchronous>, transform_indices = @transform_5, window_bounds = array<i64: 8, 1>}, {transform_indices = @transform_6, window_bounds = array<i64: 8, 512>}]} {
    %c0 = arith.constant 0 : index
    %c0_0 = arith.constant 0 : index
    %0 = vector.load %arg1[%c0, %c0_0] : memref<8x512xf32, #tpu.memory_space<vmem>>, vector<8x512xf32>
    %cst = arith.constant 0.000000e+00 : f32
    %1 = vector.broadcast %cst : f32 to vector<8x17xf32>
    %2 = tpu.concatenate %1, %0, %1 in 1 : vector<8x17xf32>, vector<8x512xf32>, vector<8x17xf32> -> vector<8x546xf32>
    %3 = vector.extract_strided_slice %2 {offsets = [0, 0], sizes = [8, 512], strides = [1, 1]} : vector<8x546xf32> to vector<8x512xf32>
    %c0_1 = arith.constant 0 : index
    %c0_2 = arith.constant 0 : index
    %4 = vector.load %arg2[%c0_1, %c0_2] : memref<9x512xf32, #tpu.memory_space<vmem>>, vector<1x512xf32>
    %5 = vector.broadcast %4 : vector<1x512xf32> to vector<8x512xf32>
    %6 = arith.mulf %3, %5 : vector<8x512xf32>
    %7 = vector.extract_strided_slice %2 {offsets = [0, 1], sizes = [8, 512], strides = [1, 1]} : vector<8x546xf32> to vector<8x512xf32>
    %c1 = arith.constant 1 : index
    %c0_3 = arith.constant 0 : index
    %8 = vector.load %arg2[%c1, %c0_3] : memref<9x512xf32, #tpu.memory_space<vmem>>, vector<1x512xf32>
    %9 = vector.broadcast %8 : vector<1x512xf32> to vector<8x512xf32>
    %10 = arith.mulf %7, %9 : vector<8x512xf32>
    %11 = vector.extract_strided_slice %2 {offsets = [0, 2], sizes = [8, 512], strides = [1, 1]} : vector<8x546xf32> to vector<8x512xf32>
    %c2 = arith.constant 2 : index
    %c0_4 = arith.constant 0 : index
    %12 = vector.load %arg2[%c2, %c0_4] : memref<9x512xf32, #tpu.memory_space<vmem>>, vector<1x512xf32>
    %13 = vector.broadcast %12 : vector<1x512xf32> to vector<8x512xf32>
    %14 = arith.mulf %11, %13 : vector<8x512xf32>
    %15 = vector.extract_strided_slice %2 {offsets = [0, 16], sizes = [8, 512], strides = [1, 1]} : vector<8x546xf32> to vector<8x512xf32>
    %c3 = arith.constant 3 : index
    %c0_5 = arith.constant 0 : index
    %16 = vector.load %arg2[%c3, %c0_5] : memref<9x512xf32, #tpu.memory_space<vmem>>, vector<1x512xf32>
    %17 = vector.broadcast %16 : vector<1x512xf32> to vector<8x512xf32>
    %18 = arith.mulf %15, %17 : vector<8x512xf32>
    %19 = vector.extract_strided_slice %2 {offsets = [0, 17], sizes = [8, 512], strides = [1, 1]} : vector<8x546xf32> to vector<8x512xf32>
    %20 = vector.extract_strided_slice %2 {offsets = [0, 18], sizes = [8, 512], strides = [1, 1]} : vector<8x546xf32> to vector<8x512xf32>
    %c5 = arith.constant 5 : index
    %c0_6 = arith.constant 0 : index
    %21 = vector.load %arg2[%c5, %c0_6] : memref<9x512xf32, #tpu.memory_space<vmem>>, vector<1x512xf32>
    %22 = vector.broadcast %21 : vector<1x512xf32> to vector<8x512xf32>
    %23 = arith.mulf %20, %22 : vector<8x512xf32>
    %24 = vector.extract_strided_slice %2 {offsets = [0, 32], sizes = [8, 512], strides = [1, 1]} : vector<8x546xf32> to vector<8x512xf32>
    %c6 = arith.constant 6 : index
    %c0_7 = arith.constant 0 : index
    %25 = vector.load %arg2[%c6, %c0_7] : memref<9x512xf32, #tpu.memory_space<vmem>>, vector<1x512xf32>
    %26 = vector.broadcast %25 : vector<1x512xf32> to vector<8x512xf32>
    %27 = arith.mulf %24, %26 : vector<8x512xf32>
    %28 = vector.extract_strided_slice %2 {offsets = [0, 33], sizes = [8, 512], strides = [1, 1]} : vector<8x546xf32> to vector<8x512xf32>
    %c7 = arith.constant 7 : index
    %c0_8 = arith.constant 0 : index
    %29 = vector.load %arg2[%c7, %c0_8] : memref<9x512xf32, #tpu.memory_space<vmem>>, vector<1x512xf32>
    %30 = vector.broadcast %29 : vector<1x512xf32> to vector<8x512xf32>
    %31 = arith.mulf %28, %30 : vector<8x512xf32>
    %32 = vector.extract_strided_slice %2 {offsets = [0, 34], sizes = [8, 512], strides = [1, 1]} : vector<8x546xf32> to vector<8x512xf32>
    %c8 = arith.constant 8 : index
    %c0_9 = arith.constant 0 : index
    %33 = vector.load %arg2[%c8, %c0_9] : memref<9x512xf32, #tpu.memory_space<vmem>>, vector<1x512xf32>
    %34 = vector.broadcast %33 : vector<1x512xf32> to vector<8x512xf32>
    %35 = arith.mulf %32, %34 : vector<8x512xf32>
    %36 = tpu.concatenate %6, %10, %14, %18, %19, %23, %27, %31, %35 in 0 : vector<8x512xf32>, vector<8x512xf32>, vector<8x512xf32>, vector<8x512xf32>, vector<8x512xf32>, vector<8x512xf32>, vector<8x512xf32>, vector<8x512xf32>, vector<8x512xf32> -> vector<72x512xf32>
    %37 = arith.truncf %36 : vector<72x512xf32> to vector<72x512xbf16>
    %c0_10 = arith.constant 0 : index
    %c0_11 = arith.constant 0 : index
    %38 = vector.load %arg3[%c0_10, %c0_11] : memref<16x72xbf16, #tpu.memory_space<vmem>>, vector<16x72xbf16>
    %cst_12 = arith.constant dense<0.000000e+00> : vector<16x512xf32>
    %39 = tpu.matmul %38, %37, %cst_12 {dimension_numbers = #tpu.dot_dimension_numbers<[1], [0], [0], [1], [0, 0, 1, 1], [], []>} : vector<16x72xbf16>, vector<72x512xbf16>, vector<16x512xf32> -> vector<16x512xf32>
    %40 = vector.extract_strided_slice %39 {offsets = [0, 0], sizes = [8, 512], strides = [1, 1]} : vector<16x512xf32> to vector<8x512xf32>
    %c0_13 = arith.constant 0 : index
    %c0_14 = arith.constant 0 : index
    %41 = vector.load %arg4[%c0_13, %c0_14] : memref<8x1xf32, #tpu.memory_space<vmem>>, vector<8x1xf32>
    %42 = vector.broadcast %41 : vector<8x1xf32> to vector<8x512xf32>
    %43 = arith.addf %40, %42 : vector<8x512xf32>
    %cst_15 = arith.constant 0.000000e+00 : f32
    %44 = vector.broadcast %cst_15 : f32 to vector<8x512xf32>
    %45 = arith.maximumf %43, %44 : vector<8x512xf32>
    %46 = vector.extract_strided_slice %39 {offsets = [8, 0], sizes = [8, 512], strides = [1, 1]} : vector<16x512xf32> to vector<8x512xf32>
    %cst_16 = arith.constant 0.000000e+00 : f32
    %47 = vector.broadcast %cst_16 : f32 to vector<8x17xf32>
    %48 = tpu.concatenate %47, %45, %47 in 1 : vector<8x17xf32>, vector<8x512xf32>, vector<8x17xf32> -> vector<8x546xf32>
    %49 = vector.extract_strided_slice %48 {offsets = [0, 0], sizes = [8, 512], strides = [1, 1]} : vector<8x546xf32> to vector<8x512xf32>
    %c0_17 = arith.constant 0 : index
    %c0_18 = arith.constant 0 : index
    %50 = vector.load %arg2[%c0_17, %c0_18] : memref<9x512xf32, #tpu.memory_space<vmem>>, vector<1x512xf32>
    %51 = vector.broadcast %50 : vector<1x512xf32> to vector<8x512xf32>
    %52 = arith.mulf %49, %51 : vector<8x512xf32>
    %53 = vector.extract_strided_slice %48 {offsets = [0, 1], sizes = [8, 512], strides = [1, 1]} : vector<8x546xf32> to vector<8x512xf32>
    %c1_19 = arith.constant 1 : index
    %c0_20 = arith.constant 0 : index
    %54 = vector.load %arg2[%c1_19, %c0_20] : memref<9x512xf32, #tpu.memory_space<vmem>>, vector<1x512xf32>
    %55 = vector.broadcast %54 : vector<1x512xf32> to vector<8x512xf32>
    %56 = arith.mulf %53, %55 : vector<8x512xf32>
    %57 = vector.extract_strided_slice %48 {offsets = [0, 2], sizes = [8, 512], strides = [1, 1]} : vector<8x546xf32> to vector<8x512xf32>
    %c2_21 = arith.constant 2 : index
    %c0_22 = arith.constant 0 : index
    %58 = vector.load %arg2[%c2_21, %c0_22] : memref<9x512xf32, #tpu.memory_space<vmem>>, vector<1x512xf32>
    %59 = vector.broadcast %58 : vector<1x512xf32> to vector<8x512xf32>
    %60 = arith.mulf %57, %59 : vector<8x512xf32>
    %61 = vector.extract_strided_slice %48 {offsets = [0, 16], sizes = [8, 512], strides = [1, 1]} : vector<8x546xf32> to vector<8x512xf32>
    %c3_23 = arith.constant 3 : index
    %c0_24 = arith.constant 0 : index
    %62 = vector.load %arg2[%c3_23, %c0_24] : memref<9x512xf32, #tpu.memory_space<vmem>>, vector<1x512xf32>
    %63 = vector.broadcast %62 : vector<1x512xf32> to vector<8x512xf32>
    %64 = arith.mulf %61, %63 : vector<8x512xf32>
    %65 = vector.extract_strided_slice %48 {offsets = [0, 17], sizes = [8, 512], strides = [1, 1]} : vector<8x546xf32> to vector<8x512xf32>
    %66 = vector.extract_strided_slice %48 {offsets = [0, 18], sizes = [8, 512], strides = [1, 1]} : vector<8x546xf32> to vector<8x512xf32>
    %c5_25 = arith.constant 5 : index
    %c0_26 = arith.constant 0 : index
    %67 = vector.load %arg2[%c5_25, %c0_26] : memref<9x512xf32, #tpu.memory_space<vmem>>, vector<1x512xf32>
    %68 = vector.broadcast %67 : vector<1x512xf32> to vector<8x512xf32>
    %69 = arith.mulf %66, %68 : vector<8x512xf32>
    %70 = vector.extract_strided_slice %48 {offsets = [0, 32], sizes = [8, 512], strides = [1, 1]} : vector<8x546xf32> to vector<8x512xf32>
    %c6_27 = arith.constant 6 : index
    %c0_28 = arith.constant 0 : index
    %71 = vector.load %arg2[%c6_27, %c0_28] : memref<9x512xf32, #tpu.memory_space<vmem>>, vector<1x512xf32>
    %72 = vector.broadcast %71 : vector<1x512xf32> to vector<8x512xf32>
    %73 = arith.mulf %70, %72 : vector<8x512xf32>
    %74 = vector.extract_strided_slice %48 {offsets = [0, 33], sizes = [8, 512], strides = [1, 1]} : vector<8x546xf32> to vector<8x512xf32>
    %c7_29 = arith.constant 7 : index
    %c0_30 = arith.constant 0 : index
    %75 = vector.load %arg2[%c7_29, %c0_30] : memref<9x512xf32, #tpu.memory_space<vmem>>, vector<1x512xf32>
    %76 = vector.broadcast %75 : vector<1x512xf32> to vector<8x512xf32>
    %77 = arith.mulf %74, %76 : vector<8x512xf32>
    %78 = vector.extract_strided_slice %48 {offsets = [0, 34], sizes = [8, 512], strides = [1, 1]} : vector<8x546xf32> to vector<8x512xf32>
    %c8_31 = arith.constant 8 : index
    %c0_32 = arith.constant 0 : index
    %79 = vector.load %arg2[%c8_31, %c0_32] : memref<9x512xf32, #tpu.memory_space<vmem>>, vector<1x512xf32>
    %80 = vector.broadcast %79 : vector<1x512xf32> to vector<8x512xf32>
    %81 = arith.mulf %78, %80 : vector<8x512xf32>
    %82 = tpu.concatenate %52, %56, %60, %64, %65, %69, %73, %77, %81 in 0 : vector<8x512xf32>, vector<8x512xf32>, vector<8x512xf32>, vector<8x512xf32>, vector<8x512xf32>, vector<8x512xf32>, vector<8x512xf32>, vector<8x512xf32>, vector<8x512xf32> -> vector<72x512xf32>
    %83 = arith.truncf %82 : vector<72x512xf32> to vector<72x512xbf16>
    %c0_33 = arith.constant 0 : index
    %c0_34 = arith.constant 0 : index
    %84 = vector.load %arg5[%c0_33, %c0_34] : memref<8x72xbf16, #tpu.memory_space<vmem>>, vector<8x72xbf16>
    %cst_35 = arith.constant dense<0.000000e+00> : vector<8x512xf32>
    %85 = tpu.matmul %84, %83, %cst_35 {dimension_numbers = #tpu.dot_dimension_numbers<[1], [0], [0], [1], [0, 0, 1, 1], [], []>} : vector<8x72xbf16>, vector<72x512xbf16>, vector<8x512xf32> -> vector<8x512xf32>
    %86 = arith.addf %85, %46 : vector<8x512xf32>
    %c0_36 = arith.constant 0 : index
    %c0_37 = arith.constant 0 : index
    %87 = vector.load %arg6[%c0_36, %c0_37] : memref<8x1xf32, #tpu.memory_space<vmem>>, vector<8x1xf32>
    %88 = vector.broadcast %87 : vector<8x1xf32> to vector<8x512xf32>
    %89 = arith.addf %86, %88 : vector<8x512xf32>
    %c0_38 = arith.constant 0 : index
    %c0_39 = arith.constant 0 : index
    %90 = vector.load %arg7[%c0_38, %c0_39] : memref<8x512xf32, #tpu.memory_space<vmem>>, vector<8x512xf32>
    tpu.vector_store %arg7[%c0_38, %c0_39], %89 {strides = array<i32>} : memref<8x512xf32, #tpu.memory_space<vmem>>, vector<8x512xf32>,
    return
  }
  func.func @transform_0(%arg0: i32) -> (i32, i32) {
    %c0_i32 = arith.constant 0 : i32
    %c0_i32_0 = arith.constant 0 : i32
    return %c0_i32, %arg0 : i32, i32
  }
  func.func @transform_1(%arg0: i32) -> (i32, i32) {
    %c0_i32 = arith.constant 0 : i32
    %c0_i32_0 = arith.constant 0 : i32
    %c0_i32_1 = arith.constant 0 : i32
    return %c0_i32, %c0_i32_0 : i32, i32
  }
  func.func @transform_2(%arg0: i32) -> (i32, i32) {
    %c0_i32 = arith.constant 0 : i32
    %c0_i32_0 = arith.constant 0 : i32
    %c0_i32_1 = arith.constant 0 : i32
    return %c0_i32, %c0_i32_0 : i32, i32
  }
  func.func @transform_3(%arg0: i32) -> (i32, i32) {
    %c0_i32 = arith.constant 0 : i32
    %c0_i32_0 = arith.constant 0 : i32
    %c0_i32_1 = arith.constant 0 : i32
    return %c0_i32, %c0_i32_0 : i32, i32
  }
  func.func @transform_4(%arg0: i32) -> (i32, i32) {
    %c0_i32 = arith.constant 0 : i32
    %c0_i32_0 = arith.constant 0 : i32
    %c0_i32_1 = arith.constant 0 : i32
    return %c0_i32, %c0_i32_0 : i32, i32
  }
  func.func @transform_5(%arg0: i32) -> (i32, i32) {
    %c0_i32 = arith.constant 0 : i32
    %c0_i32_0 = arith.constant 0 : i32
    %c0_i32_1 = arith.constant 0 : i32
    return %c0_i32, %c0_i32_0 : i32, i32
  }
  func.func @transform_6(%arg0: i32) -> (i32, i32) {
    %c0_i32 = arith.constant 0 : i32
    %c0_i32_0 = arith.constant 0 : i32
    return %c0_i32, %arg0 : i32, i32
  }
}

</mosaic_0001>

<llo_original>
// kernel: residual_conv_block.1
$region0: #{residual_conv_block.1}
  #allocation0 [shape = 'u32[]', space=smem, size = 0x4, offset = 0x4, fixed_abs, tag = 'smem constant byte address 0x4 - core index']
  #allocation1 [shape = 'u32[144,128]{1,0:T(1,128)}', space=vmem, size = 0x12000, scoped, tag = 'internal scratch']
  %s0 = inlined_call_operand.vmem [shape: f32[8,512], index: 0, kind: input, shape index: {}]
  %s1 = inlined_call_operand.vmem [shape: f32[9,512], index: 1, kind: input, shape index: {}]
  %s2 = inlined_call_operand.vmem [shape: bf16[16,72], index: 2, kind: input, shape index: {}]
  %s3 = inlined_call_operand.vmem [shape: f32[8,1], index: 3, kind: input, shape index: {}]
  %s4 = inlined_call_operand.vmem [shape: bf16[8,72], index: 4, kind: input, shape index: {}]
  %s5 = inlined_call_operand.vmem [shape: f32[8,1], index: 5, kind: input, shape index: {}]
  %s6 = inlined_call_operand.vmem [shape: f32[8,512], index: 6, kind: output, shape index: {}]
  %s7 = sld [smem:[#allocation0]]
  $region34: #{residual_conv_block.1} parent=0
    _
  %s9 = ssub.s32 1, %s7
  %s10 = scalar_select 0, %s9, %s7
  // Predicated region
  $region2: #{residual_conv_block.1} parent=0 // pred_check
    _
  $region3: #{residual_conv_block.1} parent=0 // pred_check_branch
    %12 = sbr.rel (0) target = $region5
  $region4: #{residual_conv_block.1} parent=0 // pred_region
    _
  $region5: #{residual_conv_block.1} parent=0 // pred_fallthru
    _
  // Predicated region
  $region6: #{residual_conv_block.1} parent=0 // pred_check
    _
  $region7: #{residual_conv_block.1} parent=0 // pred_check_branch
    %14 = sbr.rel (0) target = $region9
  $region8: #{residual_conv_block.1} parent=0 // pred_region
    _
  $region9: #{residual_conv_block.1} parent=0 // pred_fallthru
    _
  // Predicated region
  $region10: #{residual_conv_block.1} parent=0 // pred_check
    _
  $region11: #{residual_conv_block.1} parent=0 // pred_check_branch
    %16 = sbr.rel (0) target = $region13
  $region12: #{residual_conv_block.1} parent=0 // pred_region
    _
  $region13: #{residual_conv_block.1} parent=0 // pred_fallthru
    _
  // Predicated region
  $region14: #{residual_conv_block.1} parent=0 // pred_check
    _
  $region15: #{residual_conv_block.1} parent=0 // pred_check_branch
    %18 = sbr.rel (0) target = $region17
  $region16: #{residual_conv_block.1} parent=0 // pred_region
    _
  $region17: #{residual_conv_block.1} parent=0 // pred_fallthru
    _
  // Predicated region
  $region18: #{residual_conv_block.1} parent=0 // pred_check
    _
  $region19: #{residual_conv_block.1} parent=0 // pred_check_branch
    %20 = sbr.rel (0) target = $region21
  $region20: #{residual_conv_block.1} parent=0 // pred_region
    _
  $region21: #{residual_conv_block.1} parent=0 // pred_fallthru
    _
  // Predicated region
  $region22: #{residual_conv_block.1} parent=0 // pred_check
    _
  $region23: #{residual_conv_block.1} parent=0 // pred_check_branch
    %22 = sbr.rel (0) target = $region25
  $region24: #{residual_conv_block.1} parent=0 // pred_region
    _
  $region25: #{residual_conv_block.1} parent=0 // pred_fallthru
    _
  %v24 = vld [vmem:[%s0] sm:$0xff]
  %v25 = vld [vmem:[%s0 + $0x8] sm:$0xff]
  %v26 = vld [vmem:[%s0 + $0x10] sm:$0xff]
  %v27 = vld [vmem:[%s0 + $0x18] sm:$0xff]
  %32 = vrot.lane.b32.xlu0 %v24, 17
  %v33 = vpop.permute.xlu0 %32
  %34 = vrot.lane.b32.xlu0 %v25, 17
  %v35 = vpop.permute.xlu0 %34
  %36 = vrot.lane.b32.xlu0 %v26, 17
  %v37 = vpop.permute.xlu0 %36
  %38 = vrot.lane.b32.xlu0 %v27, 17
  %v39 = vpop.permute.xlu0 %38
  %vm40 = vcmask 138240
  %v41 = vsel %vm40, %v33, %v35
  %v42 = vsel %vm40, %v35, %v37
  %v43 = vsel %vm40, %v37, %v39
  %v49 = vsel %vm40, 0.0, %v33
  %v50 = vsel %vm40, %v39, 0.0
  %v51 = vld [vmem:[%s1] ss:$8 sm:$0xf]
  %v53 = vlaneseq
  %v54 = vshrl.u32 %v53, 7
  %v55 = vsub.s32 0, %v54
  %v56 = vrot.slane %v51, %v55
  %v57 = vlaneseq
  %v58 = vshrl.u32 %v57, 7
  %v59 = vsub.s32 1, %v58
  %v60 = vrot.slane %v51, %v59
  %v61 = vlaneseq
  %v62 = vshrl.u32 %v61, 7
  %v63 = vsub.s32 2, %v62
  %v64 = vrot.slane %v51, %v63
  %v65 = vlaneseq
  %v66 = vshrl.u32 %v65, 7
  %v67 = vsub.s32 3, %v66
  %v68 = vrot.slane %v51, %v67
  %v73 = vmul.f32 %v49, %v56
  %v74 = vmul.f32 %v41, %v60
  %v75 = vmul.f32 %v42, %v64
  %v76 = vmul.f32 %v43, %v68
  %s77 = scalar_lea.vmem %s1, 1
  %v78 = vld [vmem:[%s77] ss:$8 sm:$0xf]
  %v80 = vlaneseq
  %v81 = vshrl.u32 %v80, 7
  %v82 = vsub.s32 0, %v81
  %v83 = vrot.slane %v78, %v82
  %v84 = vlaneseq
  %v85 = vshrl.u32 %v84, 7
  %v86 = vsub.s32 1, %v85
  %v87 = vrot.slane %v78, %v86
  %v88 = vlaneseq
  %v89 = vshrl.u32 %v88, 7
  %v90 = vsub.s32 2, %v89
  %v91 = vrot.slane %v78, %v90
  %v92 = vlaneseq
  %v93 = vshrl.u32 %v92, 7
  %v94 = vsub.s32 3, %v93
  %v95 = vrot.slane %v78, %v94
  %96 = vrot.lane.b32.xlu0 %v83, 1
  %v97 = vpop.permute.xlu0 %96
  %98 = vrot.lane.b32.xlu0 %v87, 1
  %v99 = vpop.permute.xlu0 %98
  %100 = vrot.lane.b32.xlu0 %v91, 1
  %v101 = vpop.permute.xlu0 %100
  %102 = vrot.lane.b32.xlu0 %v95, 1
  %v103 = vpop.permute.xlu0 %102
  %vm104 = vcmask 7168
  %v105 = vsel %vm104, %v97, %v99
  %v106 = vsel %vm104, %v99, %v101
  %v107 = vsel %vm104, %v101, %v103
  %v113 = vmul.f32 %v49, %v97
  %v114 = vmul.f32 %v41, %v105
  %v115 = vmul.f32 %v42, %v106
  %v116 = vmul.f32 %v43, %v107
  %v117 = vmul.f32 %v50, %v103
  %s118 = scalar_lea.vmem %s1, 2
  %v119 = vld [vmem:[%s118] ss:$8 sm:$0xf]
  %v121 = vlaneseq
  %v122 = vshrl.u32 %v121, 7
  %v123 = vsub.s32 0, %v122
  %v124 = vrot.slane %v119, %v123
  %v125 = vlaneseq
  %v126 = vshrl.u32 %v125, 7
  %v127 = vsub.s32 1, %v126
  %v128 = vrot.slane %v119, %v127
  %v129 = vlaneseq
  %v130 = vshrl.u32 %v129, 7
  %v131 = vsub.s32 2, %v130
  %v132 = vrot.slane %v119, %v131
  %v133 = vlaneseq
  %v134 = vshrl.u32 %v133, 7
  %v135 = vsub.s32 3, %v134
  %v136 = vrot.slane %v119, %v135
  %137 = vrot.lane.b32.xlu0 %v124, 2
  %v138 = vpop.permute.xlu0 %137
  %139 = vrot.lane.b32.xlu0 %v128, 2
  %v140 = vpop.permute.xlu0 %139
  %141 = vrot.lane.b32.xlu0 %v132, 2
  %v142 = vpop.permute.xlu0 %141
  %143 = vrot.lane.b32.xlu0 %v136, 2
  %v144 = vpop.permute.xlu0 %143
  %vm145 = vcmask 15360
  %v146 = vsel %vm145, %v138, %v140
  %v147 = vsel %vm145, %v140, %v142
  %v148 = vsel %vm145, %v142, %v144
  %v154 = vmul.f32 %v49, %v138
  %v155 = vmul.f32 %v41, %v146
  %v156 = vmul.f32 %v42, %v147
  %v157 = vmul.f32 %v43, %v148
  %v158 = vmul.f32 %v50, %v144
  %s159 = scalar_lea.vmem %s1, 3
  %v160 = vld [vmem:[%s159] ss:$8 sm:$0xf]
  %v162 = vlaneseq
  %v163 = vshrl.u32 %v162, 7
  %v164 = vsub.s32 0, %v163
  %v165 = vrot.slane %v160, %v164
  %v166 = vlaneseq
  %v167 = vshrl.u32 %v166, 7
  %v168 = vsub.s32 1, %v167
  %v169 = vrot.slane %v160, %v168
  %v170 = vlaneseq
  %v171 = vshrl.u32 %v170, 7
  %v172 = vsub.s32 2, %v171
  %v173 = vrot.slane %v160, %v172
  %v174 = vlaneseq
  %v175 = vshrl.u32 %v174, 7
  %v176 = vsub.s32 3, %v175
  %v177 = vrot.slane %v160, %v176
  %178 = vrot.lane.b32.xlu0 %v165, 16
  %v179 = vpop.permute.xlu0 %178
  %180 = vrot.lane.b32.xlu0 %v169, 16
  %v181 = vpop.permute.xlu0 %180
  %182 = vrot.lane.b32.xlu0 %v173, 16
  %v183 = vpop.permute.xlu0 %182
  %184 = vrot.lane.b32.xlu0 %v177, 16
  %v185 = vpop.permute.xlu0 %184
  %vm186 = vcmask 130048
  %v187 = vsel %vm186, %v179, %v181
  %v188 = vsel %vm186, %v181, %v183
  %v189 = vsel %vm186, %v183, %v185
  %v195 = vmul.f32 %v49, %v179
  %v196 = vmul.f32 %v41, %v187
  %v197 = vmul.f32 %v42, %v188
  %v198 = vmul.f32 %v43, %v189
  %v199 = vmul.f32 %v50, %v185
  %s200 = scalar_lea.vmem %s1, 5
  %v201 = vld [vmem:[%s200] ss:$8 sm:$0xf]
  %v203 = vlaneseq
  %v204 = vshrl.u32 %v203, 7
  %v205 = vsub.s32 0, %v204
  %v206 = vrot.slane %v201, %v205
  %v207 = vlaneseq
  %v208 = vshrl.u32 %v207, 7
  %v209 = vsub.s32 1, %v208
  %v210 = vrot.slane %v201, %v209
  %v211 = vlaneseq
  %v212 = vshrl.u32 %v211, 7
  %v213 = vsub.s32 2, %v212
  %v214 = vrot.slane %v201, %v213
  %v215 = vlaneseq
  %v216 = vshrl.u32 %v215, 7
  %v217 = vsub.s32 3, %v216
  %v218 = vrot.slane %v201, %v217
  %219 = vrot.lane.b32.xlu0 %v206, 18
  %v220 = vpop.permute.xlu0 %219
  %221 = vrot.lane.b32.xlu0 %v210, 18
  %v222 = vpop.permute.xlu0 %221
  %223 = vrot.lane.b32.xlu0 %v214, 18
  %v224 = vpop.permute.xlu0 %223
  %225 = vrot.lane.b32.xlu0 %v218, 18
  %v226 = vpop.permute.xlu0 %225
  %vm227 = vcmask 146432
  %v228 = vsel %vm227, %v220, %v222
  %v229 = vsel %vm227, %v222, %v224
  %v230 = vsel %vm227, %v224, %v226
  %v236 = vmul.f32 %v49, %v220
  %v237 = vmul.f32 %v41, %v228
  %v238 = vmul.f32 %v42, %v229
  %v239 = vmul.f32 %v43, %v230
  %v240 = vmul.f32 %v50, %v226
  %s241 = scalar_lea.vmem %s1, 6
  %v242 = vld [vmem:[%s241] ss:$8 sm:$0xf]
  %v244 = vlaneseq
  %v245 = vshrl.u32 %v244, 7
  %v246 = vsub.s32 0, %v245
  %v247 = vrot.slane %v242, %v246
  %v248 = vlaneseq
  %v249 = vshrl.u32 %v248, 7
  %v250 = vsub.s32 1, %v249
  %v251 = vrot.slane %v242, %v250
  %v252 = vlaneseq
  %v253 = vshrl.u32 %v252, 7
  %v254 = vsub.s32 2, %v253
  %v255 = vrot.slane %v242, %v254
  %v256 = vlaneseq
  %v257 = vshrl.u32 %v256, 7
  %v258 = vsub.s32 3, %v257
  %v259 = vrot.slane %v242, %v258
  %260 = vrot.lane.b32.xlu0 %v247, 32
  %v261 = vpop.permute.xlu0 %260
  %262 = vrot.lane.b32.xlu0 %v251, 32
  %v263 = vpop.permute.xlu0 %262
  %264 = vrot.lane.b32.xlu0 %v255, 32
  %v265 = vpop.permute.xlu0 %264
  %266 = vrot.lane.b32.xlu0 %v259, 32
  %v267 = vpop.permute.xlu0 %266
  %vm268 = vcmask 261120
  %v269 = vsel %vm268, %v261, %v263
  %v270 = vsel %vm268, %v263, %v265
  %v271 = vsel %vm268, %v265, %v267
  %v277 = vmul.f32 %v49, %v261
  %v278 = vmul.f32 %v41, %v269
  %v279 = vmul.f32 %v42, %v270
  %v280 = vmul.f32 %v43, %v271
  %v281 = vmul.f32 %v50, %v267
  %s282 = scalar_lea.vmem %s1, 7
  %v283 = vld [vmem:[%s282] ss:$8 sm:$0xf]
  %v285 = vlaneseq
  %v286 = vshrl.u32 %v285, 7
  %v287 = vsub.s32 0, %v286
  %v288 = vrot.slane %v283, %v287
  %v289 = vlaneseq
  %v290 = vshrl.u32 %v289, 7
  %v291 = vsub.s32 1, %v290
  %v292 = vrot.slane %v283, %v291
  %v293 = vlaneseq
  %v294 = vshrl.u32 %v293, 7
  %v295 = vsub.s32 2, %v294
  %v296 = vrot.slane %v283, %v295
  %v297 = vlaneseq
  %v298 = vshrl.u32 %v297, 7
  %v299 = vsub.s32 3, %v298
  %v300 = vrot.slane %v283, %v299
  %301 = vrot.lane.b32.xlu0 %v288, 33
  %v302 = vpop.permute.xlu0 %301
  %303 = vrot.lane.b32.xlu0 %v292, 33
  %v304 = vpop.permute.xlu0 %303
  %305 = vrot.lane.b32.xlu0 %v296, 33
  %v306 = vpop.permute.xlu0 %305
  %307 = vrot.lane.b32.xlu0 %v300, 33
  %v308 = vpop.permute.xlu0 %307
  %vm309 = vcmask 269312
  %v310 = vsel %vm309, %v302, %v304
  %v311 = vsel %vm309, %v304, %v306
  %v312 = vsel %vm309, %v306, %v308
  %v318 = vmul.f32 %v49, %v302
  %v319 = vmul.f32 %v41, %v310
  %v320 = vmul.f32 %v42, %v311
  %v321 = vmul.f32 %v43, %v312
  %v322 = vmul.f32 %v50, %v308
  %s323 = scalar_lea.vmem %s1, 32
  %v324 = vld [vmem:[%s323] ss:$8 sm:$0xf]
  %v326 = vlaneseq
  %v327 = vshrl.u32 %v326, 7
  %v328 = vsub.s32 0, %v327
  %v329 = vrot.slane %v324, %v328
  %v330 = vlaneseq
  %v331 = vshrl.u32 %v330, 7
  %v332 = vsub.s32 1, %v331
  %v333 = vrot.slane %v324, %v332
  %v334 = vlaneseq
  %v335 = vshrl.u32 %v334, 7
  %v336 = vsub.s32 2, %v335
  %v337 = vrot.slane %v324, %v336
  %v338 = vlaneseq
  %v339 = vshrl.u32 %v338, 7
  %v340 = vsub.s32 3, %v339
  %v341 = vrot.slane %v324, %v340
  %342 = vrot.lane.b32.xlu0 %v329, 34
  %v343 = vpop.permute.xlu0 %342
  %344 = vrot.lane.b32.xlu0 %v333, 34
  %v345 = vpop.permute.xlu0 %344
  %346 = vrot.lane.b32.xlu0 %v337, 34
  %v347 = vpop.permute.xlu0 %346
  %348 = vrot.lane.b32.xlu0 %v341, 34
  %v349 = vpop.permute.xlu0 %348
  %vm350 = vcmask 277504
  %v351 = vsel %vm350, %v343, %v345
  %v352 = vsel %vm350, %v345, %v347
  %v353 = vsel %vm350, %v347, %v349
  %v359 = vmul.f32 %v49, %v343
  %v360 = vmul.f32 %v41, %v351
  %v361 = vmul.f32 %v42, %v352
  %v362 = vmul.f32 %v43, %v353
  %v363 = vmul.f32 %v50, %v349
  %369 = vrot.lane.b32.xlu0 %v113, 127
  %v370 = vpop.permute.xlu0 %369
  %371 = vrot.lane.b32.xlu0 %v114, 127
  %v372 = vpop.permute.xlu0 %371
  %373 = vrot.lane.b32.xlu0 %v115, 127
  %v374 = vpop.permute.xlu0 %373
  %375 = vrot.lane.b32.xlu0 %v116, 127
  %v376 = vpop.permute.xlu0 %375
  %377 = vrot.lane.b32.xlu0 %v117, 127
  %v378 = vpop.permute.xlu0 %377
  %vm379 = vcmask 1039360
  %v380 = vsel %vm379, %v370, %v372
  %v381 = vsel %vm379, %v372, %v374
  %v382 = vsel %vm379, %v374, %v376
  %v383 = vsel %vm379, %v376, %v378
  %393 = vrot.lane.b32.xlu0 %v154, 126
  %v394 = vpop.permute.xlu0 %393
  %395 = vrot.lane.b32.xlu0 %v155, 126
  %v396 = vpop.permute.xlu0 %395
  %397 = vrot.lane.b32.xlu0 %v156, 126
  %v398 = vpop.permute.xlu0 %397
  %399 = vrot.lane.b32.xlu0 %v157, 126
  %v400 = vpop.permute.xlu0 %399
  %401 = vrot.lane.b32.xlu0 %v158, 126
  %v402 = vpop.permute.xlu0 %401
  %vm403 = vcmask 1031168
  %v404 = vsel %vm403, %v394, %v396
  %v405 = vsel %vm403, %v396, %v398
  %v406 = vsel %vm403, %v398, %v400
  %v407 = vsel %vm403, %v400, %v402
  %417 = vrot.lane.b32.xlu0 %v195, 112
  %v418 = vpop.permute.xlu0 %417
  %419 = vrot.lane.b32.xlu0 %v196, 112
  %v420 = vpop.permute.xlu0 %419
  %421 = vrot.lane.b32.xlu0 %v197, 112
  %v422 = vpop.permute.xlu0 %421
  %423 = vrot.lane.b32.xlu0 %v198, 112
  %v424 = vpop.permute.xlu0 %423
  %425 = vrot.lane.b32.xlu0 %v199, 112
  %v426 = vpop.permute.xlu0 %425
  %vm427 = vcmask 916480
  %v428 = vsel %vm427, %v418, %v420
  %v429 = vsel %vm427, %v420, %v422
  %v430 = vsel %vm427, %v422, %v424
  %v431 = vsel %vm427, %v424, %v426
  %438 = vrot.lane.b32.xlu0 %v49, 111
  %v439 = vpop.permute.xlu0 %438
  %440 = vrot.lane.b32.xlu0 %v41, 111
  %v441 = vpop.permute.xlu0 %440
  %442 = vrot.lane.b32.xlu0 %v42, 111
  %v443 = vpop.permute.xlu0 %442
  %444 = vrot.lane.b32.xlu0 %v43, 111
  %v445 = vpop.permute.xlu0 %444
  %446 = vrot.lane.b32.xlu0 %v50, 111
  %v447 = vpop.permute.xlu0 %446
  %vm448 = vcmask 908288
  %v449 = vsel %vm448, %v439, %v441
  %v450 = vsel %vm448, %v441, %v443
  %v451 = vsel %vm448, %v443, %v445
  %v452 = vsel %vm448, %v445, %v447
  %462 = vrot.lane.b32.xlu0 %v236, 110
  %v463 = vpop.permute.xlu0 %462
  %464 = vrot.lane.b32.xlu0 %v237, 110
  %v465 = vpop.permute.xlu0 %464
  %466 = vrot.lane.b32.xlu0 %v238, 110
  %v467 = vpop.permute.xlu0 %466
  %468 = vrot.lane.b32.xlu0 %v239, 110
  %v469 = vpop.permute.xlu0 %468
  %470 = vrot.lane.b32.xlu0 %v240, 110
  %v471 = vpop.permute.xlu0 %470
  %vm472 = vcmask 900096
  %v473 = vsel %vm472, %v463, %v465
  %v474 = vsel %vm472, %v465, %v467
  %v475 = vsel %vm472, %v467, %v469
  %v476 = vsel %vm472, %v469, %v471
  %486 = vrot.lane.b32.xlu0 %v277, 96
  %v487 = vpop.permute.xlu0 %486
  %488 = vrot.lane.b32.xlu0 %v278, 96
  %v489 = vpop.permute.xlu0 %488
  %490 = vrot.lane.b32.xlu0 %v279, 96
  %v491 = vpop.permute.xlu0 %490
  %492 = vrot.lane.b32.xlu0 %v280, 96
  %v493 = vpop.permute.xlu0 %492
  %494 = vrot.lane.b32.xlu0 %v281, 96
  %v495 = vpop.permute.xlu0 %494
  %vm496 = vcmask 785408
  %v497 = vsel %vm496, %v487, %v489
  %v498 = vsel %vm496, %v489, %v491
  %v499 = vsel %vm496, %v491, %v493
  %v500 = vsel %vm496, %v493, %v495
  %510 = vrot.lane.b32.xlu0 %v318, 95
  %v511 = vpop.permute.xlu0 %510
  %512 = vrot.lane.b32.xlu0 %v319, 95
  %v513 = vpop.permute.xlu0 %512
  %514 = vrot.lane.b32.xlu0 %v320, 95
  %v515 = vpop.permute.xlu0 %514
  %516 = vrot.lane.b32.xlu0 %v321, 95
  %v517 = vpop.permute.xlu0 %516
  %518 = vrot.lane.b32.xlu0 %v322, 95
  %v519 = vpop.permute.xlu0 %518
  %vm520 = vcmask 777216
  %v521 = vsel %vm520, %v511, %v513
  %v522 = vsel %vm520, %v513, %v515
  %v523 = vsel %vm520, %v515, %v517
  %v524 = vsel %vm520, %v517, %v519
  %534 = vrot.lane.b32.xlu0 %v359, 94
  %v535 = vpop.permute.xlu0 %534
  %536 = vrot.lane.b32.xlu0 %v360, 94
  %v537 = vpop.permute.xlu0 %536
  %538 = vrot.lane.b32.xlu0 %v361, 94
  %v539 = vpop.permute.xlu0 %538
  %540 = vrot.lane.b32.xlu0 %v362, 94
  %v541 = vpop.permute.xlu0 %540
  %542 = vrot.lane.b32.xlu0 %v363, 94
  %v543 = vpop.permute.xlu0 %542
  %vm544 = vcmask 769024
  %v545 = vsel %vm544, %v535, %v537
  %v546 = vsel %vm544, %v537, %v539
  %v547 = vsel %vm544, %v539, %v541
  %v548 = vsel %vm544, %v541, %v543
  %v553 = vpack.c.bf16 %v380, %v73
  %v554 = vpack.c.bf16 %v381, %v74
  %v555 = vpack.c.bf16 %v382, %v75
  %v556 = vpack.c.bf16 %v383, %v76
  %v557 = vpack.c.bf16 %v428, %v404
  %v558 = vpack.c.bf16 %v429, %v405
  %v559 = vpack.c.bf16 %v430, %v406
  %v560 = vpack.c.bf16 %v431, %v407
  %v561 = vpack.c.bf16 %v473, %v449
  %v562 = vpack.c.bf16 %v474, %v450
  %v563 = vpack.c.bf16 %v475, %v451
  %v564 = vpack.c.bf16 %v476, %v452
  %v565 = vpack.c.bf16 %v521, %v497
  %v566 = vpack.c.bf16 %v522, %v498
  %v567 = vpack.c.bf16 %v523, %v499
  %v568 = vpack.c.bf16 %v524, %v500
  %v569 = vpack.c.bf16 %v545, %v545
  %v570 = vpack.c.bf16 %v546, %v546
  %v571 = vpack.c.bf16 %v547, %v547
  %v572 = vpack.c.bf16 %v548, %v548
  %v573 = vld [vmem:[%s2] sm:$0xf]
  %v574 = vld [vmem:[%s2 + $0x4] sm:$0xf]
  %v577 = vunpack.c.l.b16 %v573
  %v578 = vunpack.c.l.b16 %v574
  %v579 = vpack.c.b16 %v578, %v577
  %vm580 = vcmask 588800
  %v582 = vsel %vm580, %v579, 0
  %vm584 = vcmask 1043456
  %v586 = vsel %vm584, %v569, 0
  %v589 = vsel %vm584, %v570, 0
  %v592 = vsel %vm584, %v571, 0
  %v595 = vsel %vm584, %v572, 0
  %597 = vmatprep.subr.bf16.mxu0 %v554
  %598 = vmatpush1.bf16.msra.mxu0 %v553
  %599 = vmatprep.subr.bf16.mxu0 %v558
  %600 = vmatpush1.bf16.msra.mxu0 %v557
  %601 = vmatprep.subr.bf16.mxu0 %v562
  %602 = vmatpush1.bf16.msra.mxu0 %v561
  %603 = vmatprep.subr.bf16.mxu0 %v566
  %604 = vmatpush1.bf16.msra.mxu0 %v565
  %605 = vmatprep.subr.bf16.mxu0 %v589
  %606 = vmatpush1.bf16.msra.mxu0 %v586
  %607 = vmatprep.subr.bf16.mxu0 0
  %608 = vmatpush1.bf16.msra.mxu0 0
  %609 = vmatprep.subr.bf16.mxu0 0
  %610 = vmatpush1.bf16.msra.mxu0 0
  %611 = vmatprep.subr.bf16.mxu0 0
  %612 = vmatpush1.bf16.msra.mxu0 0
  %613 = vmatprep.subr.bf16.mxu0 0
  %614 = vmatpush1.bf16.msra.mxu0 0
  %615 = vmatprep.subr.bf16.mxu0 0
  %616 = vmatpush1.bf16.msra.mxu0 0
  %617 = vmatprep.subr.bf16.mxu0 0
  %618 = vmatpush1.bf16.msra.mxu0 0
  %619 = vmatprep.subr.bf16.mxu0 0
  %620 = vmatpush1.bf16.msra.mxu0 0
  %621 = vmatprep.subr.bf16.mxu0 0
  %622 = vmatpush1.bf16.msra.mxu0 0
  %623 = vmatprep.subr.bf16.mxu0 0
  %624 = vmatpush1.bf16.msra.mxu0 0
  %625 = vmatprep.subr.bf16.mxu0 0
  %626 = vmatpush1.bf16.msra.mxu0 0
  %627 = vmatprep.subr.bf16.mxu0 0
  %628 = vmatpush1.bf16.msra.mxu0 0
  %629 = vmatprep.mubr.bf16.mxu0 0
  %630 = vmatmul.mubr.bf16.gmra.mrb[0].mxu0 %v582
  %v631 = vpop.f32.mrb[0].mxu0
  %v632 = vadd.f32 0.0, %v631
  %v633 = vpop.f32.mrb[0].mxu0
  %v634 = vadd.f32 0.0, %v633
  %v635 = vpop.f32.mrb[0].mxu0
  %v636 = vadd.f32 0.0, %v635
  %v637 = vpop.f32.mrb[0].mxu0
  %v638 = vadd.f32 0.0, %v637
  %639 = vdwg.mxu0
  %640 = vmatprep.subr.bf16.mxu0 %v556
  %641 = vmatpush1.bf16.msra.mxu0 %v555
  %642 = vmatprep.subr.bf16.mxu0 %v560
  %643 = vmatpush1.bf16.msra.mxu0 %v559
  %644 = vmatprep.subr.bf16.mxu0 %v564
  %645 = vmatpush1.bf16.msra.mxu0 %v563
  %646 = vmatprep.subr.bf16.mxu0 %v568
  %647 = vmatpush1.bf16.msra.mxu0 %v567
  %648 = vmatprep.subr.bf16.mxu0 %v595
  %649 = vmatpush1.bf16.msra.mxu0 %v592
  %650 = vmatprep.subr.bf16.mxu0 0
  %651 = vmatpush1.bf16.msra.mxu0 0
  %652 = vmatprep.subr.bf16.mxu0 0
  %653 = vmatpush1.bf16.msra.mxu0 0
  %654 = vmatprep.subr.bf16.mxu0 0
  %655 = vmatpush1.bf16.msra.mxu0 0
  %656 = vmatprep.subr.bf16.mxu0 0
  %657 = vmatpush1.bf16.msra.mxu0 0
  %658 = vmatprep.subr.bf16.mxu0 0
  %659 = vmatpush1.bf16.msra.mxu0 0
  %660 = vmatprep.subr.bf16.mxu0 0
  %661 = vmatpush1.bf16.msra.mxu0 0
  %662 = vmatprep.subr.bf16.mxu0 0
  %663 = vmatpush1.bf16.msra.mxu0 0
  %664 = vmatprep.subr.bf16.mxu0 0
  %665 = vmatpush1.bf16.msra.mxu0 0
  %666 = vmatprep.subr.bf16.mxu0 0
  %667 = vmatpush1.bf16.msra.mxu0 0
  %668 = vmatprep.subr.bf16.mxu0 0
  %669 = vmatpush1.bf16.msra.mxu0 0
  %670 = vmatprep.subr.bf16.mxu0 0
  %671 = vmatpush1.bf16.msra.mxu0 0
  %672 = vmatprep.mubr.bf16.mxu0 0
  %673 = vmatmul.mubr.bf16.gmra.mrb[0].mxu0 %v582
  %v674 = vpop.f32.mrb[0].mxu0
  %v675 = vadd.f32 0.0, %v674
  %v676 = vpop.f32.mrb[0].mxu0
  %v677 = vadd.f32 0.0, %v676
  %v678 = vpop.f32.mrb[0].mxu0
  %v679 = vadd.f32 0.0, %v678
  %v680 = vpop.f32.mrb[0].mxu0
  %v681 = vadd.f32 0.0, %v680
  %682 = vdwg.mxu0
  %v683 = vld [vmem:[%s3] sm:$0xff]
  %685 = vset.pattern.permute.xlu0 0
  %686 = vperm.xlu0 %685, %v683
  %v687 = vpop.permute.xlu0 %686
  %v689 = vadd.f32 %v632, %v687
  %v690 = vadd.f32 %v634, %v687
  %v691 = vadd.f32 %v675, %v687
  %v692 = vadd.f32 %v677, %v687
  %v693 = vmax.f32 %v689, 0.0
  %v694 = vmax.f32 %v690, 0.0
  %v695 = vmax.f32 %v691, 0.0
  %v696 = vmax.f32 %v692, 0.0
  %701 = vrot.lane.b32.xlu0 %v693, 17
  %v702 = vpop.permute.xlu0 %701
  %703 = vrot.lane.b32.xlu0 %v694, 17
  %v704 = vpop.permute.xlu0 %703
  %705 = vrot.lane.b32.xlu0 %v695, 17
  %v706 = vpop.permute.xlu0 %705
  %707 = vrot.lane.b32.xlu0 %v696, 17
  %v708 = vpop.permute.xlu0 %707
  %v709 = vsel %vm40, %v702, %v704
  %v710 = vsel %vm40, %v704, %v706
  %v711 = vsel %vm40, %v706, %v708
  %v717 = vsel %vm40, 0.0, %v702
  %v718 = vsel %vm40, %v708, 0.0
  %v719 = vmul.f32 %v717, %v56
  %v720 = vmul.f32 %v709, %v60
  %v721 = vmul.f32 %v710, %v64
  %v722 = vmul.f32 %v711, %v68
  %v723 = vmul.f32 %v717, %v97
  %v724 = vmul.f32 %v709, %v105
  %v725 = vmul.f32 %v710, %v106
  %v726 = vmul.f32 %v711, %v107
  %v727 = vmul.f32 %v718, %v103
  %v728 = vmul.f32 %v717, %v138
  %v729 = vmul.f32 %v709, %v146
  %v730 = vmul.f32 %v710, %v147
  %v731 = vmul.f32 %v711, %v148
  %v732 = vmul.f32 %v718, %v144
  %v733 = vmul.f32 %v717, %v179
  %v734 = vmul.f32 %v709, %v187
  %v735 = vmul.f32 %v710, %v188
  %v736 = vmul.f32 %v711, %v189
  %v737 = vmul.f32 %v718, %v185
  %v738 = vmul.f32 %v717, %v220
  %v739 = vmul.f32 %v709, %v228
  %v740 = vmul.f32 %v710, %v229
  %v741 = vmul.f32 %v711, %v230
  %v742 = vmul.f32 %v718, %v226
  %v743 = vmul.f32 %v717, %v261
  %v744 = vmul.f32 %v709, %v269
  %v745 = vmul.f32 %v710, %v270
  %v746 = vmul.f32 %v711, %v271
  %v747 = vmul.f32 %v718, %v267
  %v748 = vmul.f32 %v717, %v302
  %v749 = vmul.f32 %v709, %v310
  %v750 = vmul.f32 %v710, %v311
  %v751 = vmul.f32 %v711, %v312
  %v752 = vmul.f32 %v718, %v308
  %v753 = vmul.f32 %v717, %v343
  %v754 = vmul.f32 %v709, %v351
  %v755 = vmul.f32 %v710, %v352
  %v756 = vmul.f32 %v711, %v353
  %v757 = vmul.f32 %v718, %v349
  %763 = vrot.lane.b32.xlu0 %v723, 127
  %v764 = vpop.permute.xlu0 %763
  %765 = vrot.lane.b32.xlu0 %v724, 127
  %v766 = vpop.permute.xlu0 %765
  %767 = vrot.lane.b32.xlu0 %v725, 127
  %v768 = vpop.permute.xlu0 %767
  %769 = vrot.lane.b32.xlu0 %v726, 127
  %v770 = vpop.permute.xlu0 %769
  %771 = vrot.lane.b32.xlu0 %v727, 127
  %v772 = vpop.permute.xlu0 %771
  %v773 = vsel %vm379, %v764, %v766
  %v774 = vsel %vm379, %v766, %v768
  %v775 = vsel %vm379, %v768, %v770
  %v776 = vsel %vm379, %v770, %v772
  %786 = vrot.lane.b32.xlu0 %v728, 126
  %v787 = vpop.permute.xlu0 %786
  %788 = vrot.lane.b32.xlu0 %v729, 126
  %v789 = vpop.permute.xlu0 %788
  %790 = vrot.lane.b32.xlu0 %v730, 126
  %v791 = vpop.permute.xlu0 %790
  %792 = vrot.lane.b32.xlu0 %v731, 126
  %v793 = vpop.permute.xlu0 %792
  %794 = vrot.lane.b32.xlu0 %v732, 126
  %v795 = vpop.permute.xlu0 %794
  %v796 = vsel %vm403, %v787, %v789
  %v797 = vsel %vm403, %v789, %v791
  %v798 = vsel %vm403, %v791, %v793
  %v799 = vsel %vm403, %v793, %v795
  %809 = vrot.lane.b32.xlu0 %v733, 112
  %v810 = vpop.permute.xlu0 %809
  %811 = vrot.lane.b32.xlu0 %v734, 112
  %v812 = vpop.permute.xlu0 %811
  %813 = vrot.lane.b32.xlu0 %v735, 112
  %v814 = vpop.permute.xlu0 %813
  %815 = vrot.lane.b32.xlu0 %v736, 112
  %v816 = vpop.permute.xlu0 %815
  %817 = vrot.lane.b32.xlu0 %v737, 112
  %v818 = vpop.permute.xlu0 %817
  %v819 = vsel %vm427, %v810, %v812
  %v820 = vsel %vm427, %v812, %v814
  %v821 = vsel %vm427, %v814, %v816
  %v822 = vsel %vm427, %v816, %v818
  %829 = vrot.lane.b32.xlu0 %v717, 111
  %v830 = vpop.permute.xlu0 %829
  %831 = vrot.lane.b32.xlu0 %v709, 111
  %v832 = vpop.permute.xlu0 %831
  %833 = vrot.lane.b32.xlu0 %v710, 111
  %v834 = vpop.permute.xlu0 %833
  %835 = vrot.lane.b32.xlu0 %v711, 111
  %v836 = vpop.permute.xlu0 %835
  %837 = vrot.lane.b32.xlu0 %v718, 111
  %v838 = vpop.permute.xlu0 %837
  %v839 = vsel %vm448, %v830, %v832
  %v840 = vsel %vm448, %v832, %v834
  %v841 = vsel %vm448, %v834, %v836
  %v842 = vsel %vm448, %v836, %v838
  %852 = vrot.lane.b32.xlu0 %v738, 110
  %v853 = vpop.permute.xlu0 %852
  %854 = vrot.lane.b32.xlu0 %v739, 110
  %v855 = vpop.permute.xlu0 %854
  %856 = vrot.lane.b32.xlu0 %v740, 110
  %v857 = vpop.permute.xlu0 %856
  %858 = vrot.lane.b32.xlu0 %v741, 110
  %v859 = vpop.permute.xlu0 %858
  %860 = vrot.lane.b32.xlu0 %v742, 110
  %v861 = vpop.permute.xlu0 %860
  %v862 = vsel %vm472, %v853, %v855
  %v863 = vsel %vm472, %v855, %v857
  %v864 = vsel %vm472, %v857, %v859
  %v865 = vsel %vm472, %v859, %v861
  %875 = vrot.lane.b32.xlu0 %v743, 96
  %v876 = vpop.permute.xlu0 %875
  %877 = vrot.lane.b32.xlu0 %v744, 96
  %v878 = vpop.permute.xlu0 %877
  %879 = vrot.lane.b32.xlu0 %v745, 96
  %v880 = vpop.permute.xlu0 %879
  %881 = vrot.lane.b32.xlu0 %v746, 96
  %v882 = vpop.permute.xlu0 %881
  %883 = vrot.lane.b32.xlu0 %v747, 96
  %v884 = vpop.permute.xlu0 %883
  %v885 = vsel %vm496, %v876, %v878
  %v886 = vsel %vm496, %v878, %v880
  %v887 = vsel %vm496, %v880, %v882
  %v888 = vsel %vm496, %v882, %v884
  %898 = vrot.lane.b32.xlu0 %v748, 95
  %v899 = vpop.permute.xlu0 %898
  %900 = vrot.lane.b32.xlu0 %v749, 95
  %v901 = vpop.permute.xlu0 %900
  %902 = vrot.lane.b32.xlu0 %v750, 95
  %v903 = vpop.permute.xlu0 %902
  %904 = vrot.lane.b32.xlu0 %v751, 95
  %v905 = vpop.permute.xlu0 %904
  %906 = vrot.lane.b32.xlu0 %v752, 95
  %v907 = vpop.permute.xlu0 %906
  %v908 = vsel %vm520, %v899, %v901
  %v909 = vsel %vm520, %v901, %v903
  %v910 = vsel %vm520, %v903, %v905
  %v911 = vsel %vm520, %v905, %v907
  %921 = vrot.lane.b32.xlu0 %v753, 94
  %v922 = vpop.permute.xlu0 %921
  %923 = vrot.lane.b32.xlu0 %v754, 94
  %v924 = vpop.permute.xlu0 %923
  %925 = vrot.lane.b32.xlu0 %v755, 94
  %v926 = vpop.permute.xlu0 %925
  %927 = vrot.lane.b32.xlu0 %v756, 94
  %v928 = vpop.permute.xlu0 %927
  %929 = vrot.lane.b32.xlu0 %v757, 94
  %v930 = vpop.permute.xlu0 %929
  %v931 = vsel %vm544, %v922, %v924
  %v932 = vsel %vm544, %v924, %v926
  %v933 = vsel %vm544, %v926, %v928
  %v934 = vsel %vm544, %v928, %v930
  %v939 = vpack.c.bf16 %v773, %v719
  %v940 = vpack.c.bf16 %v774, %v720
  %v941 = vpack.c.bf16 %v775, %v721
  %v942 = vpack.c.bf16 %v776, %v722
  %v943 = vpack.c.bf16 %v819, %v796
  %v944 = vpack.c.bf16 %v820, %v797
  %v945 = vpack.c.bf16 %v821, %v798
  %v946 = vpack.c.bf16 %v822, %v799
  %v947 = vpack.c.bf16 %v862, %v839
  %v948 = vpack.c.bf16 %v863, %v840
  %v949 = vpack.c.bf16 %v864, %v841
  %v950 = vpack.c.bf16 %v865, %v842
  %v951 = vpack.c.bf16 %v908, %v885
  %v952 = vpack.c.bf16 %v909, %v886
  %v953 = vpack.c.bf16 %v910, %v887
  %v954 = vpack.c.bf16 %v911, %v888
  %v955 = vpack.c.bf16 %v931, %v931
  %v956 = vpack.c.bf16 %v932, %v932
  %v957 = vpack.c.bf16 %v933, %v933
  %v958 = vpack.c.bf16 %v934, %v934
  %v959 = vld [vmem:[%s4] sm:$0xf]
  %v961 = vsel %vm580, %v959, 0
  %v964 = vsel %vm584, %v955, 0
  %v967 = vsel %vm584, %v956, 0
  %v970 = vsel %vm584, %v957, 0
  %v973 = vsel %vm584, %v958, 0
  %975 = vmatprep.subr.bf16.mxu0 %v940
  %976 = vmatpush1.bf16.msra.mxu0 %v939
  %977 = vmatprep.subr.bf16.mxu0 %v944
  %978 = vmatpush1.bf16.msra.mxu0 %v943
  %979 = vmatprep.subr.bf16.mxu0 %v948
  %980 = vmatpush1.bf16.msra.mxu0 %v947
  %981 = vmatprep.subr.bf16.mxu0 %v952
  %982 = vmatpush1.bf16.msra.mxu0 %v951
  %983 = vmatprep.subr.bf16.mxu0 %v967
  %984 = vmatpush1.bf16.msra.mxu0 %v964
  %985 = vmatprep.subr.bf16.mxu0 0
  %986 = vmatpush1.bf16.msra.mxu0 0
  %987 = vmatprep.subr.bf16.mxu0 0
  %988 = vmatpush1.bf16.msra.mxu0 0
  %989 = vmatprep.subr.bf16.mxu0 0
  %990 = vmatpush1.bf16.msra.mxu0 0
  %991 = vmatprep.subr.bf16.mxu0 0
  %992 = vmatpush1.bf16.msra.mxu0 0
  %993 = vmatprep.subr.bf16.mxu0 0
  %994 = vmatpush1.bf16.msra.mxu0 0
  %995 = vmatprep.subr.bf16.mxu0 0
  %996 = vmatpush1.bf16.msra.mxu0 0
  %997 = vmatprep.subr.bf16.mxu0 0
  %998 = vmatpush1.bf16.msra.mxu0 0
  %999 = vmatprep.subr.bf16.mxu0 0
  %1000 = vmatpush1.bf16.msra.mxu0 0
  %1001 = vmatprep.subr.bf16.mxu0 0
  %1002 = vmatpush1.bf16.msra.mxu0 0
  %1003 = vmatprep.subr.bf16.mxu0 0
  %1004 = vmatpush1.bf16.msra.mxu0 0
  %1005 = vmatprep.subr.bf16.mxu0 0
  %1006 = vmatpush1.bf16.msra.mxu0 0
  %1007 = vmatprep.mubr.bf16.mxu0 0
  %1008 = vmatmul.mubr.bf16.gmra.mrb[0].mxu0 %v961
  %v1009 = vpop.f32.mrb[0].mxu0
  %v1010 = vadd.f32 %v636, %v1009
  %v1011 = vpop.f32.mrb[0].mxu0
  %v1012 = vadd.f32 %v638, %v1011
  %v1013 = vpop.f32.mrb[0].mxu0
  %v1014 = vpop.f32.mrb[0].mxu0
  %1015 = vdwg.mxu0
  %1016 = vmatprep.subr.bf16.mxu0 %v942
  %1017 = vmatpush1.bf16.msra.mxu0 %v941
  %1018 = vmatprep.subr.bf16.mxu0 %v946
  %1019 = vmatpush1.bf16.msra.mxu0 %v945
  %1020 = vmatprep.subr.bf16.mxu0 %v950
  %1021 = vmatpush1.bf16.msra.mxu0 %v949
  %1022 = vmatprep.subr.bf16.mxu0 %v954
  %1023 = vmatpush1.bf16.msra.mxu0 %v953
  %1024 = vmatprep.subr.bf16.mxu0 %v973
  %1025 = vmatpush1.bf16.msra.mxu0 %v970
  %1026 = vmatprep.subr.bf16.mxu0 0
  %1027 = vmatpush1.bf16.msra.mxu0 0
  %1028 = vmatprep.subr.bf16.mxu0 0
  %1029 = vmatpush1.bf16.msra.mxu0 0
  %1030 = vmatprep.subr.bf16.mxu0 0
  %1031 = vmatpush1.bf16.msra.mxu0 0
  %1032 = vmatprep.subr.bf16.mxu0 0
  %1033 = vmatpush1.bf16.msra.mxu0 0
  %1034 = vmatprep.subr.bf16.mxu0 0
  %1035 = vmatpush1.bf16.msra.mxu0 0
  %1036 = vmatprep.subr.bf16.mxu0 0
  %1037 = vmatpush1.bf16.msra.mxu0 0
  %1038 = vmatprep.subr.bf16.mxu0 0
  %1039 = vmatpush1.bf16.msra.mxu0 0
  %1040 = vmatprep.subr.bf16.mxu0 0
  %1041 = vmatpush1.bf16.msra.mxu0 0
  %1042 = vmatprep.subr.bf16.mxu0 0
  %1043 = vmatpush1.bf16.msra.mxu0 0
  %1044 = vmatprep.subr.bf16.mxu0 0
  %1045 = vmatpush1.bf16.msra.mxu0 0
  %1046 = vmatprep.subr.bf16.mxu0 0
  %1047 = vmatpush1.bf16.msra.mxu0 0
  %1048 = vmatprep.mubr.bf16.mxu0 0
  %1049 = vmatmul.mubr.bf16.gmra.mrb[0].mxu0 %v961
  %v1050 = vpop.f32.mrb[0].mxu0
  %v1051 = vadd.f32 %v679, %v1050
  %v1052 = vpop.f32.mrb[0].mxu0
  %v1053 = vadd.f32 %v681, %v1052
  %v1054 = vpop.f32.mrb[0].mxu0
  %v1055 = vpop.f32.mrb[0].mxu0
  %1056 = vdwg.mxu0
  %v1057 = vld [vmem:[%s5] sm:$0xff]
  %1059 = vset.pattern.permute.xlu0 0
  %1060 = vperm.xlu0 %1059, %v1057
  %v1061 = vpop.permute.xlu0 %1060
  %v1063 = vadd.f32 %v1010, %v1061
  %v1064 = vadd.f32 %v1012, %v1061
  %v1065 = vadd.f32 %v1051, %v1061
  %v1066 = vadd.f32 %v1053, %v1061
  %1067 = vst [vmem:[%s6] sm:$0xff] %v1063
  %1068 = vst [vmem:[%s6 + $0x8] sm:$0xff] %v1064
  %1069 = vst [vmem:[%s6 + $0x10] sm:$0xff] %v1065
  %1070 = vst [vmem:[%s6 + $0x18] sm:$0xff] %v1066
  // Predicated region
  $region26: #{residual_conv_block.1} parent=0 // pred_check
    _
  $region27: #{residual_conv_block.1} parent=0 // pred_check_branch
    %1072 = sbr.rel (0) target = $region29
  $region28: #{residual_conv_block.1} parent=0 // pred_region
    _
  $region29: #{residual_conv_block.1} parent=0 // pred_fallthru
    _
  // Predicated region
  $region30: #{residual_conv_block.1} parent=0 // pred_check
    _
  $region31: #{residual_conv_block.1} parent=0 // pred_check_branch
    %1074 = sbr.rel (0) target = $region33
  $region32: #{residual_conv_block.1} parent=0 // pred_region
    _
  $region33: #{residual_conv_block.1} parent=0 // pred_fallthru
    _

</llo_original>
